<compile_context>
chip_gen: v7x
topology: tpu7x:2x2x1
jax: 0.10.0
libtpu: 0.0.40
codegen_flags: <defaults>
</compile_context>

<pallas_src>
import functools

import jax
import jax.numpy as jnp
from jax import lax
from jax.experimental import pallas as pl
from jax.experimental.pallas import tpu as pltpu


def _usable_vmem_bytes():
    """Per-TensorCore VMEM with headroom (v5e/v6e: 128 MiB, v7x: 64 MiB)."""
    try:
        info = pltpu.get_tpu_info()
        cap = int(getattr(info, "vmem_capacity_bytes", 64 * 1024 * 1024))
    except Exception:
        cap = 64 * 1024 * 1024  # conservative default = v7x per-TC VMEM
    return int(cap * 0.85)      # leave headroom for compiler-internal scratch


def _choose_block_k(K, R, V, itemsize, usable_vmem):
    """Largest K tile whose working set (streamed M + f32 temps) fits VMEM."""
    # Per K row: double-buffered M row + z/tanh/(w*t) f32 temps + p*M f32 temp.
    per_row = 2 * R * itemsize + 3 * V * 4 + R * 4 + 16
    resident = 2 * (R * V + 2 * V) * itemsize + 4 * R * 4   # weights + out/acc
    budget = max(usable_vmem // 2 - resident, 2 << 20)
    tk = budget // per_row
    tk = int(min(max(tk, 8), 2048))
    tk -= tk % 8
    tk = max(tk, 8)
    return K if tk >= K else tk


def _memory_cell_kernel(K, TK, need_mask,
                        m_ref, wmT_ref, wmb_ref, w_ref, o_ref,
                        m_sc, l_sc, acc_sc):
    """One K tile of the online-softmax attention readout.

    m_ref:   (TK, R)  streamed block of M (native dtype)
    wmT_ref: (R, V)   resident, pre-transposed W_M.weight
    wmb_ref: (1, V)   resident W_M.bias
    w_ref:   (1, V)   resident W.weight (W.bias cancels in the softmax)
    o_ref:   (1, R)   shared attention readout (same for every batch row)
    m_sc/l_sc: (1,1)  f32 running max / running sum
    acc_sc:  (1, R)   f32 running (unnormalized) readout
    """
    i = pl.program_id(0)

    @pl.when(i == 0)
    def _():
        m_sc[...] = jnp.full_like(m_sc, -jnp.inf)
        l_sc[...] = jnp.zeros_like(l_sc)
        acc_sc[...] = jnp.zeros_like(acc_sc)

    m_tile = m_ref[...]                                      # (TK, R), native dtype

    # z = M_tile @ W_M^T + b_M, with the weight already presented as (R, V)
    # so the MXU sees its canonical (contract, N) layout (no XLU transpose).
    z = lax.dot_general(
        m_tile, wmT_ref[...],
        dimension_numbers=(((1,), (0,)), ((), ())),
        preferred_element_type=jnp.float32,
    ) + wmb_ref[...].astype(jnp.float32)                     # (TK, V), f32 accumulate
    t = jnp.tanh(z)                                          # EUP, f32

    # Per-row score: VPU broadcast-multiply + lane-axis reduce (keeps the MXU
    # free from a degenerate M=1 matmul).  W.bias is constant over K and
    # cancels exactly in the softmax, so it is folded out.
    w_row = w_ref[...].astype(jnp.float32)                   # (1, V)
    s = jnp.sum(t * w_row, axis=-1, keepdims=True)           # (TK, 1), f32

    m_f32 = m_tile.astype(jnp.float32)
    if need_mask:  # static Python gate: only when the last K block is partial
        kidx = i * TK + lax.broadcasted_iota(jnp.int32, s.shape, 0)
        valid = kidx < K
        s = jnp.where(valid, s, -jnp.inf)
        m_f32 = jnp.where(valid, m_f32, 0.0)

    # Online (flash-style) softmax update across the K tiles.
    tile_max = jnp.max(s, axis=0, keepdims=True)             # (1, 1)
    m_prev = m_sc[...]
    m_new = jnp.maximum(m_prev, tile_max)
    alpha = jnp.exp(m_prev - m_new)                          # (1, 1)
    p = jnp.exp(s - m_new)                                   # (TK, 1)
    l_sc[...] = alpha * l_sc[...] + jnp.sum(p, axis=0, keepdims=True)
    # Partial readout sum_k p_k * M[k, :] as a sublane reduce (no M=1 matmul).
    acc_sc[...] = alpha * acc_sc[...] + jnp.sum(p * m_f32, axis=0, keepdims=True)
    m_sc[...] = m_new

    @pl.when(i == pl.num_programs(0) - 1)
    def _():
        # Exact normalization: a single (1, R) divide; approx reciprocal on a
        # scalar denominator saved nothing and cost ~1e-3 accuracy.
        o_ref[...] = (acc_sc[...] / l_sc[...]).astype(o_ref.dtype)


def memory_cell(h, M, WM_w, WM_b, W_w, W_b, Wh_w=None, Wh_b=None,
                *, block_k=None, operand_dtype=None):
    """Literal Memory_cell.forward.

    h:    (B, R)  -- only its batch size affects the output (the original
                     forward overwrites `dot = att_h + att_M` with
                     `dot = tanh(att_M)`, so W_h / att_h are dead code).
    M:    (K, R)  memory slots
    WM_w: (V, R), WM_b: (V,)  -- W_M linear
    W_w:  (1, V), W_b: (1,)   -- W linear (bias cancels in the softmax)
    returns (B, R)
    """
    B, R = h.shape
    K, Rm = M.shape
    assert R == Rm, "hidden dims of h and M must match"
    V = WM_w.shape[0]
    assert WM_w.shape == (V, R) and WM_b.shape == (V,)
    assert W_w.shape == (1, V)

    # Parameter-side prep (transpose/reshape of weights; amortizable — hoist
    # out of the hot path for repeated calls).  M itself is NOT padded or
    # copied: full-axis block shapes + in-kernel masking handle ragged K.
    WM_wT = jnp.asarray(WM_w).T                  # (R, V): canonical MXU layout
    WM_b_row = jnp.asarray(WM_b).reshape(1, V)
    W_w_row = jnp.asarray(W_w).reshape(1, V)
    if operand_dtype is not None:                # e.g. jnp.bfloat16: halves HBM/VMEM
        M = M.astype(operand_dtype)
        WM_wT = WM_wT.astype(operand_dtype)

    itemsize = jnp.dtype(M.dtype).itemsize
    usable_vmem = _usable_vmem_bytes()

    TK = block_k if block_k is not None else _choose_block_k(K, R, V, itemsize, usable_vmem)
    TK = min(int(TK), K)
    if TK < K:
        TK = max(8, TK - TK % 8)                 # sublane-aligned unless full-K block
    nk = pl.cdiv(K, TK)
    need_mask = (K % TK) != 0                    # static; aligned case pays no mask

    cost = pl.CostEstimate(
        flops=2 * K * V * R + 2 * K * V + 2 * K * R,
        transcendentals=K * V + K,
        bytes_accessed=int((K * R + R * V + 2 * V) * itemsize + R * 4),
    )

    # VMEM: double-buffered streamed M tile + resident weights + f32 temps.
    est = (2 * TK * R * itemsize                 # M tile (double-buffered)
           + 2 * (R * V + 2 * V) * itemsize      # weights / biases
           + 3 * TK * V * 4                      # z / tanh / w*t temps
           + TK * R * 4 + TK * 8                 # p*M temp, scores
           + 4 * R * 4                           # out block + acc scratch
           + (2 << 20))                          # slack
    vmem_limit = int(min(max(est, 16 << 20), usable_vmem))

    r = pl.pallas_call(
        functools.partial(_memory_cell_kernel, K, TK, need_mask),
        out_shape=jax.ShapeDtypeStruct((1, R), jnp.float32),
        grid_spec=pltpu.PrefetchScalarGridSpec(
            num_scalar_prefetch=0,
            grid=(nk,),
            in_specs=[
                pl.BlockSpec((TK, R), lambda i: (i, 0)),   # M: streamed over K
                pl.BlockSpec((R, V), lambda i: (0, 0)),    # W_M^T: resident
                pl.BlockSpec((1, V), lambda i: (0, 0)),    # W_M bias: resident
                pl.BlockSpec((1, V), lambda i: (0, 0)),    # W weight: resident
            ],
            out_specs=pl.BlockSpec((1, R), lambda i: (0, 0)),
            scratch_shapes=[
                pltpu.VMEM((1, 1), jnp.float32),   # running max
                pltpu.VMEM((1, 1), jnp.float32),   # running sum
                pltpu.VMEM((1, R), jnp.float32),   # running readout
            ],
        ),
        compiler_params=pltpu.CompilerParams(
            dimension_semantics=("arbitrary",),    # K is a reduction axis
            vmem_limit_bytes=vmem_limit,
        ),
        cost_estimate=cost,
    )(M, WM_wT, WM_b_row, W_w_row)

    # TODO(synk): on v7x, split K across the two TensorCores (per-core partial
    # max/sum/acc + tiny combine) if this op ever becomes compute-bound.

    # The readout is identical for every batch row; broadcasting is pure layout.
    return jnp.broadcast_to(r, (B, R)).astype(h.dtype)


def memory_cell_ref(h, M, WM_w, WM_b, W_w, W_b, Wh_w, Wh_b):
    """Pure-JAX, literal replication of the PyTorch forward (including dead code)."""
    B, R = h.shape
    K = M.shape[0]
    V = WM_w.shape[0]
    att_h = h @ Wh_w.T + Wh_b                              # computed, then discarded
    M_expand = jnp.broadcast_to(M[None], (B, K, R))
    att_M = M_expand @ WM_w.T + WM_b                       # (B, K, V)
    dot = att_h[:, None, :] + att_M                        # overwritten (as in PyTorch)
    dot = jnp.tanh(att_M)
    dot = dot.reshape(-1, V) @ W_w.T + W_b                 # (B*K, 1)
    dot = dot.reshape(-1, K)                               # (B, K)
    att = jax.nn.softmax(dot, axis=1)
    # torch.max / torch.argmax of att are computed in the original but unused.
    att_res = jnp.einsum("bk,bkr->br", att, M_expand)
    return att_res


if __name__ == "__main__":
    key = jax.random.PRNGKey(0)
    kh, km, k1, k2, k3, k4, k5, k6 = jax.random.split(key, 8)

    # Small shapes consistent with the module: h (B, R=rnn_size), M (K, R),
    # V = att_hid_size.
    B, K, R, V = 4, 8, 32, 48

    h = jax.random.normal(kh, (B, R), dtype=jnp.float32)
    M = jax.random.normal(km, (K, R), dtype=jnp.float32)

    Wh_w = jax.random.normal(k1, (V, R), dtype=jnp.float32) * 0.1
    Wh_b = jax.random.normal(k2, (V,), dtype=jnp.float32) * 0.1
    WM_w = jax.random.normal(k3, (V, R), dtype=jnp.float32) * 0.1
    WM_b = jax.random.normal(k4, (V,), dtype=jnp.float32) * 0.1
    W_w = jax.random.normal(k5, (1, V), dtype=jnp.float32) * 0.1
    W_b = jax.random.normal(k6, (1,), dtype=jnp.float32) * 0.1

    # 1) Small, single-block path (block == full array, no masking).
    out = memory_cell(h, M, WM_w, WM_b, W_w, W_b, Wh_w, Wh_b)
    out = jax.block_until_ready(out)
    ref = memory_cell_ref(h, M, WM_w, WM_b, W_w, W_b, Wh_w, Wh_b)
    assert out.shape == (B, R)
    assert jnp.allclose(out, ref, atol=1e-4, rtol=1e-4), (
        f"mismatch vs reference, max abs diff = {float(jnp.max(jnp.abs(out - ref)))}"
    )

    # 2) Exercise the K-tiled online-softmax path with a partial (masked) last
    #    block: K=200, block_k=64 -> grid of 4 K tiles.
    K2 = 200
    M2 = jax.random.normal(jax.random.PRNGKey(1), (K2, R), dtype=jnp.float32)
    out2 = memory_cell(h, M2, WM_w, WM_b, W_w, W_b, Wh_w, Wh_b, block_k=64)
    out2 = jax.block_until_ready(out2)
    ref2 = memory_cell_ref(h, M2, WM_w, WM_b, W_w, W_b, Wh_w, Wh_b)
    assert jnp.allclose(out2, ref2, atol=1e-4, rtol=1e-4), (
        f"tiled-path mismatch, max abs diff = {float(jnp.max(jnp.abs(out2 - ref2)))}"
    )

    print("KERNEL_OK")
</pallas_src>

<mosaic_0001>
module attributes {stable_mosaic.version = 11 : i64} {
  func.func @_memory_cell_kernel(%arg0: i32, %arg1: memref<8x32xf32, #tpu.memory_space<vmem>>, %arg2: memref<32x48xf32, #tpu.memory_space<vmem>>, %arg3: memref<1x48xf32, #tpu.memory_space<vmem>>, %arg4: memref<1x48xf32, #tpu.memory_space<vmem>>, %arg5: memref<1x32xf32, #tpu.memory_space<vmem>>, %arg6: memref<1x1xf32, #tpu.memory_space<vmem>>, %arg7: memref<1x1xf32, #tpu.memory_space<vmem>>, %arg8: memref<1x32xf32, #tpu.memory_space<vmem>>) attributes {dimension_semantics = [#tpu.dimension_semantics<arbitrary>], iteration_bounds = array<i64: 1>, scalar_prefetch = 0 : i64, scratch_operands = 3 : i64, tpu.core_type = #tpu.core_type<tc>, window_params = [{transform_indices = @transform_0, window_bounds = array<i64: 8, 32>}, {pipeline_mode = #tpu.pipeline_mode<synchronous>, transform_indices = @transform_1, window_bounds = array<i64: 32, 48>}, {pipeline_mode = #tpu.pipeline_mode<synchronous>, transform_indices = @transform_2, window_bounds = array<i64: 1, 48>}, {pipeline_mode = #tpu.pipeline_mode<synchronous>, transform_indices = @transform_3, window_bounds = array<i64: 1, 48>}, {pipeline_mode = #tpu.pipeline_mode<synchronous>, transform_indices = @transform_4, window_bounds = array<i64: 1, 32>}]} {
    %c0_i32 = arith.constant 0 : i32
    %0 = arith.cmpi eq, %arg0, %c0_i32 : i32
    %1 = arith.extui %0 : i1 to i32
    %c0_i32_0 = arith.constant 0 : i32
    %2 = arith.cmpi ne, %1, %c0_i32_0 : i32
    scf.if %2 {
      %cst_26 = arith.constant 0xFF800000 : f32
      %43 = vector.broadcast %cst_26 : f32 to vector<1x1xf32>
      %c0_27 = arith.constant 0 : index
      %c0_28 = arith.constant 0 : index
      %44 = vector.load %arg6[%c0_27, %c0_28] : memref<1x1xf32, #tpu.memory_space<vmem>>, vector<1x1xf32>
      tpu.vector_store %arg6[%c0_27, %c0_28], %43 {strides = array<i32>} : memref<1x1xf32, #tpu.memory_space<vmem>>, vector<1x1xf32>,
      %cst_29 = arith.constant 0.000000e+00 : f32
      %45 = vector.broadcast %cst_29 : f32 to vector<1x1xf32>
      %c0_30 = arith.constant 0 : index
      %c0_31 = arith.constant 0 : index
      %46 = vector.load %arg7[%c0_30, %c0_31] : memref<1x1xf32, #tpu.memory_space<vmem>>, vector<1x1xf32>
      tpu.vector_store %arg7[%c0_30, %c0_31], %45 {strides = array<i32>} : memref<1x1xf32, #tpu.memory_space<vmem>>, vector<1x1xf32>,
      %cst_32 = arith.constant 0.000000e+00 : f32
      %47 = vector.broadcast %cst_32 : f32 to vector<1x32xf32>
      %c0_33 = arith.constant 0 : index
      %c0_34 = arith.constant 0 : index
      %48 = vector.load %arg8[%c0_33, %c0_34] : memref<1x32xf32, #tpu.memory_space<vmem>>, vector<1x32xf32>
      tpu.vector_store %arg8[%c0_33, %c0_34], %47 {strides = array<i32>} : memref<1x32xf32, #tpu.memory_space<vmem>>, vector<1x32xf32>,
    } else {
    }
    %c0 = arith.constant 0 : index
    %c0_1 = arith.constant 0 : index
    %3 = vector.load %arg1[%c0, %c0_1] : memref<8x32xf32, #tpu.memory_space<vmem>>, vector<8x32xf32>
    %c0_2 = arith.constant 0 : index
    %c0_3 = arith.constant 0 : index
    %4 = vector.load %arg2[%c0_2, %c0_3] : memref<32x48xf32, #tpu.memory_space<vmem>>, vector<32x48xf32>
    %cst = arith.constant dense<0.000000e+00> : vector<8x48xf32>
    %5 = tpu.matmul %3, %4, %cst {dimension_numbers = #tpu.dot_dimension_numbers<[1], [0], [0], [1], [0, 0, 1, 1], [], []>} : vector<8x32xf32>, vector<32x48xf32>, vector<8x48xf32> -> vector<8x48xf32>
    %c0_4 = arith.constant 0 : index
    %c0_5 = arith.constant 0 : index
    %6 = vector.load %arg3[%c0_4, %c0_5] : memref<1x48xf32, #tpu.memory_space<vmem>>, vector<1x48xf32>
    %7 = vector.broadcast %6 : vector<1x48xf32> to vector<8x48xf32>
    %8 = arith.addf %5, %7 : vector<8x48xf32>
    %9 = math.tanh %8 : vector<8x48xf32>
    %c0_6 = arith.constant 0 : index
    %c0_7 = arith.constant 0 : index
    %10 = vector.load %arg4[%c0_6, %c0_7] : memref<1x48xf32, #tpu.memory_space<vmem>>, vector<1x48xf32>
    %11 = vector.broadcast %10 : vector<1x48xf32> to vector<8x48xf32>
    %12 = arith.mulf %9, %11 : vector<8x48xf32>
    %cst_8 = arith.constant dense<0.000000e+00> : vector<8xf32>
    %13 = vector.multi_reduction <add>, %12, %cst_8 [1] : vector<8x48xf32> to vector<8xf32>
    %14 = vector.shape_cast %13 : vector<8xf32> to vector<8x1xf32>
    %cst_9 = arith.constant dense<0xFF800000> : vector<1xf32>
    %15 = vector.multi_reduction <maximumf>, %14, %cst_9 [0] : vector<8x1xf32> to vector<1xf32>
    %16 = vector.shape_cast %15 : vector<1xf32> to vector<1x1xf32>
    %c0_10 = arith.constant 0 : index
    %c0_11 = arith.constant 0 : index
    %17 = vector.load %arg6[%c0_10, %c0_11] : memref<1x1xf32, #tpu.memory_space<vmem>>, vector<1x1xf32>
    %18 = arith.maximumf %17, %16 : vector<1x1xf32>
    %19 = arith.subf %17, %18 : vector<1x1xf32>
    %20 = math.exp %19 : vector<1x1xf32>
    %21 = vector.broadcast %18 : vector<1x1xf32> to vector<8x1xf32>
    %22 = arith.subf %14, %21 : vector<8x1xf32>
    %23 = math.exp %22 : vector<8x1xf32>
    %c0_12 = arith.constant 0 : index
    %c0_13 = arith.constant 0 : index
    %24 = vector.load %arg7[%c0_12, %c0_13] : memref<1x1xf32, #tpu.memory_space<vmem>>, vector<1x1xf32>
    %25 = arith.mulf %20, %24 : vector<1x1xf32>
    %cst_14 = arith.constant dense<0.000000e+00> : vector<1xf32>
    %26 = vector.multi_reduction <add>, %23, %cst_14 [0] : vector<8x1xf32> to vector<1xf32>
    %27 = vector.shape_cast %26 : vector<1xf32> to vector<1x1xf32>
    %28 = arith.addf %25, %27 : vector<1x1xf32>
    %c0_15 = arith.constant 0 : index
    %c0_16 = arith.constant 0 : index
    %29 = vector.load %arg7[%c0_15, %c0_16] : memref<1x1xf32, #tpu.memory_space<vmem>>, vector<1x1xf32>
    tpu.vector_store %arg7[%c0_15, %c0_16], %28 {strides = array<i32>} : memref<1x1xf32, #tpu.memory_space<vmem>>, vector<1x1xf32>,
    %c0_17 = arith.constant 0 : index
    %c0_18 = arith.constant 0 : index
    %30 = vector.load %arg8[%c0_17, %c0_18] : memref<1x32xf32, #tpu.memory_space<vmem>>, vector<1x32xf32>
    %31 = vector.broadcast %20 : vector<1x1xf32> to vector<1x32xf32>
    %32 = arith.mulf %31, %30 : vector<1x32xf32>
    %33 = vector.broadcast %23 : vector<8x1xf32> to vector<8x32xf32>
    %34 = arith.mulf %33, %3 : vector<8x32xf32>
    %cst_19 = arith.constant dense<0.000000e+00> : vector<32xf32>
    %35 = vector.multi_reduction <add>, %34, %cst_19 [0] : vector<8x32xf32> to vector<32xf32>
    %36 = vector.shape_cast %35 : vector<32xf32> to vector<1x32xf32>
    %37 = arith.addf %32, %36 : vector<1x32xf32>
    %c0_20 = arith.constant 0 : index
    %c0_21 = arith.constant 0 : index
    %38 = vector.load %arg8[%c0_20, %c0_21] : memref<1x32xf32, #tpu.memory_space<vmem>>, vector<1x32xf32>
    tpu.vector_store %arg8[%c0_20, %c0_21], %37 {strides = array<i32>} : memref<1x32xf32, #tpu.memory_space<vmem>>, vector<1x32xf32>,
    %c0_22 = arith.constant 0 : index
    %c0_23 = arith.constant 0 : index
    %39 = vector.load %arg6[%c0_22, %c0_23] : memref<1x1xf32, #tpu.memory_space<vmem>>, vector<1x1xf32>
    tpu.vector_store %arg6[%c0_22, %c0_23], %18 {strides = array<i32>} : memref<1x1xf32, #tpu.memory_space<vmem>>, vector<1x1xf32>,
    %c0_i32_24 = arith.constant 0 : i32
    %40 = arith.cmpi eq, %arg0, %c0_i32_24 : i32
    %41 = arith.extui %40 : i1 to i32
    %c0_i32_25 = arith.constant 0 : i32
    %42 = arith.cmpi ne, %41, %c0_i32_25 : i32
    scf.if %42 {
      %c0_26 = arith.constant 0 : index
      %c0_27 = arith.constant 0 : index
      %43 = vector.load %arg8[%c0_26, %c0_27] : memref<1x32xf32, #tpu.memory_space<vmem>>, vector<1x32xf32>
      %c0_28 = arith.constant 0 : index
      %c0_29 = arith.constant 0 : index
      %44 = vector.load %arg7[%c0_28, %c0_29] : memref<1x1xf32, #tpu.memory_space<vmem>>, vector<1x1xf32>
      %45 = vector.broadcast %44 : vector<1x1xf32> to vector<1x32xf32>
      %46 = arith.divf %43, %45 : vector<1x32xf32>
      %c0_30 = arith.constant 0 : index
      %c0_31 = arith.constant 0 : index
      %47 = vector.load %arg5[%c0_30, %c0_31] : memref<1x32xf32, #tpu.memory_space<vmem>>, vector<1x32xf32>
      tpu.vector_store %arg5[%c0_30, %c0_31], %46 {strides = array<i32>} : memref<1x32xf32, #tpu.memory_space<vmem>>, vector<1x32xf32>,
    } else {
    }
    return
  }
  func.func @transform_0(%arg0: i32) -> (i32, i32) {
    %c0_i32 = arith.constant 0 : i32
    %c0_i32_0 = arith.constant 0 : i32
    return %arg0, %c0_i32 : i32, i32
  }
  func.func @transform_1(%arg0: i32) -> (i32, i32) {
    %c0_i32 = arith.constant 0 : i32
    %c0_i32_0 = arith.constant 0 : i32
    %c0_i32_1 = arith.constant 0 : i32
    return %c0_i32, %c0_i32_0 : i32, i32
  }
  func.func @transform_2(%arg0: i32) -> (i32, i32) {
    %c0_i32 = arith.constant 0 : i32
    %c0_i32_0 = arith.constant 0 : i32
    %c0_i32_1 = arith.constant 0 : i32
    return %c0_i32, %c0_i32_0 : i32, i32
  }
  func.func @transform_3(%arg0: i32) -> (i32, i32) {
    %c0_i32 = arith.constant 0 : i32
    %c0_i32_0 = arith.constant 0 : i32
    %c0_i32_1 = arith.constant 0 : i32
    return %c0_i32, %c0_i32_0 : i32, i32
  }
  func.func @transform_4(%arg0: i32) -> (i32, i32) {
    %c0_i32 = arith.constant 0 : i32
    %c0_i32_0 = arith.constant 0 : i32
    %c0_i32_1 = arith.constant 0 : i32
    return %c0_i32, %c0_i32_0 : i32, i32
  }
}

</mosaic_0001>

<llo_original>
// kernel: tpu_custom_call.1
$region0: #{tpu_custom_call.1}
  #allocation0 [shape = 'u32[]', space=smem, size = 0x4, offset = 0x4, fixed_abs, tag = 'smem constant byte address 0x4 - core index']
  #allocation1 [shape = 'u32[144,128]{1,0:T(1,128)}', space=vmem, size = 0x12000, scoped, tag = 'internal scratch']
  #allocation2 [shape = 'f32[1,1]{1,0:T(1,128)}', space=vmem, size = 0x200, scoped, tag = 'scratch operand']
  #allocation3 [shape = 'f32[1,1]{1,0:T(1,128)}', space=vmem, size = 0x200, scoped, tag = 'scratch operand']
  #allocation4 [shape = 'f32[1,32]{1,0:T(1,128)}', space=vmem, size = 0x200, scoped, tag = 'scratch operand']
  %s0 = inlined_call_operand.hbm [shape: f32[8,32], index: 0, kind: input, shape index: {}]
  %s1 = inlined_call_operand.hbm [shape: f32[32,48], index: 1, kind: input, shape index: {}]
  %s2 = inlined_call_operand.vmem [shape: f32[1,48], index: 2, kind: input, shape index: {}]
  %s3 = inlined_call_operand.vmem [shape: f32[1,48], index: 3, kind: input, shape index: {}]
  %s4 = inlined_call_operand.hbm [shape: f32[1,32], index: 4, kind: output, shape index: {}]
  %s5 = sld [smem:[#allocation0]]
  $region42: #{tpu_custom_call.1} parent=0
    _
  %s7 = ssub.s32 1, %s5
  %s8 = scalar_select 0, %s7, %s5
  $region1: #{tpu_custom_call.1} parent=0
    #allocation5 [shape = 'u8[4096]{0}', space=vmem, size = 0x1000, scoped, tag = 'input window, operand 0, single buffered']
    #allocation6 [shape = 's32[1]{0}', space=sflag, size = 0x4, scoped, tag = 'scoped memory for tpu_custom_call.1']
    #allocation7 [shape = 's32[1]{0}', space=sflag, size = 0x4, scoped, tag = 'scoped memory for tpu_custom_call.1']
    #allocation8 [shape = 'u8[16384]{0}', space=vmem, size = 0x4000, scoped, tag = 'input window, operand 1, single buffered']
    #allocation9 [shape = 's32[1]{0}', space=sflag, size = 0x4, scoped, tag = 'scoped memory for tpu_custom_call.1']
    #allocation10 [shape = 'u8[512]{0}', space=vmem, size = 0x400, scoped, tag = 'output window, operand 0, single buffered']
    %9 = vsyncpa [#allocation6], 0
    %10 = vsyncpa [#allocation9], 0
    %11 = vsyncpa [#allocation7], 0
    // Predicated region
    $region2: #{tpu_custom_call.1} parent=1 // pred_check
      _
    $region3: #{tpu_custom_call.1} parent=1 // pred_check_branch
      %13 = sbr.rel (0) target = $region5
    $region4: #{tpu_custom_call.1} parent=1 // pred_region
      %s15 = ssub.s32 128, 128
      %16 = vsyncadd [#allocation6], %s15
      %s18 = sshll.u32 [#allocation5], 4
      %s19 = int_to_ptr.vmem [resolvable:$true] %s18
      %21 = dma.hbm_to_vmem [thread:$0]  %s0, 128, %s19, [#allocation6]
    $region5: #{tpu_custom_call.1} parent=1 // pred_fallthru
      _
    // Predicated region
    $region6: #{tpu_custom_call.1} parent=1 // pred_check
      _
    $region7: #{tpu_custom_call.1} parent=1 // pred_check_branch
      %23 = sbr.rel (0) target = $region9
    $region8: #{tpu_custom_call.1} parent=1 // pred_region
      %s25 = ssub.s32 512, 512
      %26 = vsyncadd [#allocation9], %s25
      %s27 = sshll.u32 [#allocation8], 4
      %s28 = int_to_ptr.vmem [resolvable:$true] %s27
      %33 = dma.hbm_to_vmem [thread:$0]  %s1, 512, %s28, [#allocation9], 128, 128, 8
    $region9: #{tpu_custom_call.1} parent=1 // pred_fallthru
      _
    // Predicated region
    $region10: #{tpu_custom_call.1} parent=1 // pred_check
      _
    $region11: #{tpu_custom_call.1} parent=1 // pred_check_branch
      %35 = sbr.rel (0) target = $region13
    $region12: #{tpu_custom_call.1} parent=1 // pred_region
      _
    $region13: #{tpu_custom_call.1} parent=1 // pred_fallthru
      _
    // Predicated region
    $region14: #{tpu_custom_call.1} parent=1 // pred_check
      _
    $region15: #{tpu_custom_call.1} parent=1 // pred_check_branch
      %37 = sbr.rel (0) target = $region17
    $region16: #{tpu_custom_call.1} parent=1 // pred_region
      _
    $region17: #{tpu_custom_call.1} parent=1 // pred_fallthru
      _
    // Predicated region
    $region18: #{tpu_custom_call.1} parent=1 // pred_check
      _
    $region19: #{tpu_custom_call.1} parent=1 // pred_check_branch
      %39 = sbr.rel (0) target = $region21
    $region20: #{tpu_custom_call.1} parent=1 // pred_region
      %40 = dma.done [#allocation6], 128
    $region21: #{tpu_custom_call.1} parent=1 // pred_fallthru
      _
    // Predicated region
    $region22: #{tpu_custom_call.1} parent=1 // pred_check
      _
    $region23: #{tpu_custom_call.1} parent=1 // pred_check_branch
      %42 = sbr.rel (0) target = $region25
    $region24: #{tpu_custom_call.1} parent=1 // pred_region
      %43 = dma.done [#allocation9], 512
    $region25: #{tpu_custom_call.1} parent=1 // pred_fallthru
      _
    %p44 = scmp.eq.s32.totalorder 0, 0
    // Predicated region
    $region26: #{tpu_custom_call.1} parent=1 // pred_check
      %p45 = pneg %p44
    $region27: #{tpu_custom_call.1} parent=1 // pred_check_branch
      %47 = sbr.rel (%p45) target = $region29
    $region28: #{tpu_custom_call.1} parent=1 // pred_region
      %vm48 = vcmask 0
      %49 = vst.msk [vmem:[#allocation2] sm:$0x1] %vm48, -inf
      %50 = vst.msk [vmem:[#allocation3] sm:$0x1] %vm48, 0.0
      %vm51 = vcmask 253952
      %52 = vst.msk [vmem:[#allocation4] sm:$0x1] %vm51, 0.0
    $region29: #{tpu_custom_call.1} parent=1 // pred_fallthru
      _
    %v53 = vld [vmem:[#allocation5] sm:$0xff]
    %v54 = vld [vmem:[#allocation8] sm:$0xff]
    %v55 = vld [vmem:[#allocation8 + $0x8] sm:$0xff]
    %v56 = vld [vmem:[#allocation8 + $0x10] sm:$0xff]
    %v57 = vld [vmem:[#allocation8 + $0x18] sm:$0xff]
    %v58 = vld [vmem:[%s2] sm:$0x1]
    %v60 = vlaneseq
    %v61 = vshrl.u32 %v60, 7
    %v62 = vsub.s32 0, %v61
    %v63 = vrot.slane %v58, %v62
    %vm65 = vcmask 261120
    %v67 = vsel %vm65, %v53, 0
    %69 = vmatprep.subr.mxu0 0.0
    %70 = vmatpush1.msra.mxu0 %v54
    %71 = vmatprep.subr.mxu0 0.0
    %72 = vmatpush1.msra.mxu0 %v55
    %73 = vmatprep.subr.mxu0 0.0
    %74 = vmatpush1.msra.mxu0 %v56
    %75 = vmatprep.subr.mxu0 0.0
    %76 = vmatpush1.msra.mxu0 %v57
    %77 = vmatprep.subr.mxu0 0.0
    %78 = vmatpush1.msra.mxu0 0.0
    %79 = vmatprep.subr.mxu0 0.0
    %80 = vmatpush1.msra.mxu0 0.0
    %81 = vmatprep.subr.mxu0 0.0
    %82 = vmatpush1.msra.mxu0 0.0
    %83 = vmatprep.subr.mxu0 0.0
    %84 = vmatpush1.msra.mxu0 0.0
    %85 = vmatprep.subr.mxu0 0.0
    %86 = vmatpush1.msra.mxu0 0.0
    %87 = vmatprep.subr.mxu0 0.0
    %88 = vmatpush1.msra.mxu0 0.0
    %89 = vmatprep.subr.mxu0 0.0
    %90 = vmatpush1.msra.mxu0 0.0
    %91 = vmatprep.subr.mxu0 0.0
    %92 = vmatpush1.msra.mxu0 0.0
    %93 = vmatprep.subr.mxu0 0.0
    %94 = vmatpush1.msra.mxu0 0.0
    %95 = vmatprep.subr.mxu0 0.0
    %96 = vmatpush1.msra.mxu0 0.0
    %97 = vmatprep.subr.mxu0 0.0
    %98 = vmatpush1.msra.mxu0 0.0
    %99 = vmatprep.subr.mxu0 0.0
    %100 = vmatpush1.msra.mxu0 0.0
    %101 = vmatprep.subr.mxu0 0.0
    %102 = vmatpush1.msra.mxu0 0.0
    %103 = vmatprep.subr.mxu0 0.0
    %104 = vmatpush1.msra.mxu0 0.0
    %105 = vmatprep.subr.mxu0 0.0
    %106 = vmatpush1.msra.mxu0 0.0
    %107 = vmatprep.subr.mxu0 0.0
    %108 = vmatpush1.msra.mxu0 0.0
    %109 = vmatprep.subr.mxu0 0.0
    %110 = vmatpush1.msra.mxu0 0.0
    %111 = vmatprep.subr.mxu0 0.0
    %112 = vmatpush1.msra.mxu0 0.0
    %113 = vmatprep.subr.mxu0 0.0
    %114 = vmatpush1.msra.mxu0 0.0
    %115 = vmatprep.subr.mxu0 0.0
    %116 = vmatpush1.msra.mxu0 0.0
    %117 = vmatprep.subr.mxu0 0.0
    %118 = vmatpush1.msra.mxu0 0.0
    %119 = vmatprep.subr.mxu0 0.0
    %120 = vmatpush1.msra.mxu0 0.0
    %121 = vmatprep.subr.mxu0 0.0
    %122 = vmatpush1.msra.mxu0 0.0
    %123 = vmatprep.subr.mxu0 0.0
    %124 = vmatpush1.msra.mxu0 0.0
    %125 = vmatprep.subr.mxu0 0.0
    %126 = vmatpush1.msra.mxu0 0.0
    %127 = vmatprep.subr.mxu0 0.0
    %128 = vmatpush1.msra.mxu0 0.0
    %129 = vmatprep.subr.mxu0 0.0
    %130 = vmatpush1.msra.mxu0 0.0
    %131 = vmatprep.subr.mxu0 0.0
    %132 = vmatpush1.msra.mxu0 0.0
    %133 = vmatprep.mubr.f32.mxu0 0.0
    %134 = vmatmul.mubr.f32.gmra.mrb[0].mxu0 %v67
    %v135 = vpop.f32.mrb[0].mxu0
    %v136 = vadd.f32 %v63, %v135
    %v137 = vpop.f32.mrb[0].mxu0
    %138 = vdwg.mxu0
    %v139 = vtanh.pop %v136
    %v140 = vld [vmem:[%s3] sm:$0x1]
    %v142 = vlaneseq
    %v143 = vshrl.u32 %v142, 7
    %v144 = vsub.s32 0, %v143
    %v145 = vrot.slane %v140, %v144
    %v147 = vmul.f32 %v139, %v145
    %vm148 = vcmask 392192
    %v149 = vsel %vm148, %v147, 0.0
    %150 = vadd.xlane.f32.xlu0 %v149
    %v151 = vpop.xlane.xlu0 %150
    %v152 = vrot.slane %v151, 4
    %v153 = vmax.f32 %v151, %v152
    %v154 = vrot.slane %v153, 2
    %v155 = vmax.f32 %v153, %v154
    %v156 = vrot.slane %v155, 1
    %v157 = vmax.f32 %v155, %v156
    %v158 = vld [vmem:[#allocation2] sm:$0x1]
    %v159 = vmax.f32 %v158, %v157
    %v160 = vsub.f32 %v158, %v159
    %v161 = vmul.f32 %v160, 1.442695
    %v162 = vpow.pop %v161
    %v164 = vlaneseq
    %v165 = vshrl.u32 %v164, 7
    %v166 = vsub.s32 0, %v165
    %v167 = vrot.slane %v159, %v166
    %v169 = vsub.f32 %v151, %v167
    %v170 = vmul.f32 %v169, 1.442695
    %v171 = vpow.pop %v170
    %v172 = vld [vmem:[#allocation3] sm:$0x1]
    %v173 = vmul.f32 %v162, %v172
    %vm174 = vcmask 7168
    %v175 = vsel %vm174, %v171, 0.0
    %v176 = vrot.slane %v175, 4
    %v177 = vadd.f32 %v175, %v176
    %v178 = vrot.slane %v177, 2
    %v179 = vadd.f32 %v177, %v178
    %v180 = vrot.slane %v179, 1
    %v181 = vadd.f32 %v179, %v180
    %v182 = vadd.f32 %v173, %v181
    %vm183 = vcmask 0
    %184 = vst.msk [vmem:[#allocation3] sm:$0x1] %vm183, %v182
    %v185 = vld [vmem:[#allocation4] sm:$0x1]
    %187 = vset.pattern.permute.xlu0 0
    %188 = vperm.xlu0 %187, %v162
    %v189 = vpop.permute.xlu0 %188
    %v191 = vlaneseq
    %v192 = vshrl.u32 %v191, 7
    %v193 = vsub.s32 0, %v192
    %v194 = vrot.slane %v189, %v193
    %v195 = vmul.f32 %v194, %v185
    %197 = vset.pattern.permute.xlu0 0
    %198 = vperm.xlu0 %197, %v171
    %v199 = vpop.permute.xlu0 %198
    %v201 = vmul.f32 %v199, %v53
    %v202 = vsel %vm65, %v201, 0.0
    %v203 = vrot.slane %v202, 4
    %v204 = vadd.f32 %v202, %v203
    %v205 = vrot.slane %v204, 2
    %v206 = vadd.f32 %v204, %v205
    %v207 = vrot.slane %v206, 1
    %v208 = vadd.f32 %v206, %v207
    %v209 = vadd.f32 %v195, %v208
    %vm210 = vcmask 253952
    %211 = vst.msk [vmem:[#allocation4] sm:$0x1] %vm210, %v209
    %212 = vst.msk [vmem:[#allocation2] sm:$0x1] %vm183, %v159
    // Predicated region
    $region30: #{tpu_custom_call.1} parent=1 // pred_check
      %p213 = pneg %p44
    $region31: #{tpu_custom_call.1} parent=1 // pred_check_branch
      %215 = sbr.rel (%p213) target = $region33
    $region32: #{tpu_custom_call.1} parent=1 // pred_region
      %v216 = vld [vmem:[#allocation4] sm:$0x1]
      %v217 = vld [vmem:[#allocation3] sm:$0x1]
      %219 = vset.pattern.permute.xlu0 0
      %220 = vperm.xlu0 %219, %v217
      %v221 = vpop.permute.xlu0 %220
      %v223 = vlaneseq
      %v224 = vshrl.u32 %v223, 7
      %v225 = vsub.s32 0, %v224
      %v226 = vrot.slane %v221, %v225
      %v227 = vrcp.pop %v226
      %v228 = vmul.f32 %v216, %v227
      %229 = vst.msk [vmem:[#allocation10] sm:$0x1] %vm210, %v228
    $region33: #{tpu_custom_call.1} parent=1 // pred_fallthru
      _
    // Predicated region
    $region34: #{tpu_custom_call.1} parent=1 // pred_check
      _
    $region35: #{tpu_custom_call.1} parent=1 // pred_check_branch
      %231 = sbr.rel (0) target = $region37
    $region36: #{tpu_custom_call.1} parent=1 // pred_region
      %s233 = ssub.s32 16, 16
      %234 = vsyncadd [#allocation7], %s233
      %s236 = sshll.u32 [#allocation10], 4
      %s237 = int_to_ptr.vmem [resolvable:$true] %s236
      %239 = dma.vmem_to_hbm [thread:$0]  %s237, 16, %s4, [#allocation7]
    $region37: #{tpu_custom_call.1} parent=1 // pred_fallthru
      _
    // Predicated region
    $region38: #{tpu_custom_call.1} parent=1 // pred_check
      _
    $region39: #{tpu_custom_call.1} parent=1 // pred_check_branch
      %241 = sbr.rel (0) target = $region41
    $region40: #{tpu_custom_call.1} parent=1 // pred_region
      %242 = dma.done [#allocation7], 16
    $region41: #{tpu_custom_call.1} parent=1 // pred_fallthru
      _
    %243 = vsyncpa [#allocation6], 1
    %244 = vsyncpa [#allocation9], 1
    %245 = vsyncpa [#allocation7], 1

</llo_original>
